<compile_context>
chip_gen: v7x
topology: tpu7x:2x2x1
jax: 0.10.0
libtpu: 0.0.40
codegen_flags: <defaults>
</compile_context>

<pallas_src>
import functools

import jax
import jax.numpy as jnp
from jax.experimental import pallas as pl
from jax.experimental.pallas import tpu as pltpu

_MASK_VALUE = -1e30      # large finite negative: avoids exp(-inf - -inf) NaNs
_LN_EPS = 1e-5


def _layer_norm(x, gamma, beta, eps=_LN_EPS):
    x = x.astype(jnp.float32)
    mean = jnp.mean(x, axis=-1, keepdims=True)
    var = jnp.mean(jnp.square(x - mean), axis=-1, keepdims=True)
    return (x - mean) * jax.lax.rsqrt(var + eps) * gamma + beta


# ---------------------------------------------------------------------------
# Kernel 1: LayerNorm1 + Q/K/V projections (row-tiled, fully parallel grid).
# ---------------------------------------------------------------------------
def _qkv_kernel(x_ref, ln1_g_ref, ln1_b_ref,
                wq_ref, wk_ref, wv_ref, bq_ref, bk_ref, bv_ref,
                q_ref, k_ref, v_ref, *, sm_scale):
    x = x_ref[0]                                              # (bq, D) f32
    xn = _layer_norm(x, ln1_g_ref[0], ln1_b_ref[0])
    xc = xn.astype(wq_ref.dtype)                              # bf16/f32 MXU feed
    q = jnp.dot(xc, wq_ref[...], preferred_element_type=jnp.float32) + bq_ref[0]
    k = jnp.dot(xc, wk_ref[...], preferred_element_type=jnp.float32) + bk_ref[0]
    v = jnp.dot(xc, wv_ref[...], preferred_element_type=jnp.float32) + bv_ref[0]
    # Fold 1/sqrt(head_dim) into Q: N*D multiplies instead of N*N later.
    q_ref[0] = (q * sm_scale).astype(q_ref.dtype)
    k_ref[0] = k.astype(k_ref.dtype)
    v_ref[0] = v.astype(v_ref.dtype)


# ---------------------------------------------------------------------------
# Kernel 2: flash-style causal attention + output proj + LN2 + MLP (+res).
# ---------------------------------------------------------------------------
def _attn_mlp_kernel(x_ref, q_ref, k_ref, v_ref,
                     wp_ref, bp_ref, ln2_g_ref, ln2_b_ref,
                     w1_ref, b1_ref, w2_ref, b2_ref,
                     out_ref, m_ref, l_ref, acc_ref,
                     *, with_residuals, approx_recip):
    qi = pl.program_id(1)
    ki = pl.program_id(2)
    num_kv = pl.num_programs(2)

    block_q = q_ref.shape[2]
    block_k = k_ref.shape[2]

    @pl.when(ki == 0)
    def _init():
        m_ref[...] = jnp.full_like(m_ref, _MASK_VALUE)
        l_ref[...] = jnp.zeros_like(l_ref)
        acc_ref[...] = jnp.zeros_like(acc_ref)

    # Causal tiling: KV tiles strictly above the diagonal contribute nothing.
    @pl.when(ki * block_k < (qi + 1) * block_q)
    def _accumulate():
        q = q_ref[0]                                          # (H, bq, hd)
        k = k_ref[0]                                          # (H, bk, hd)
        v = v_ref[0]                                          # (H, bk, hd)
        # Head-batched QK^T: contract head_dim, batch over heads; no explicit
        # .T -- dot_general feeds the MXU directly.
        s = jax.lax.dot_general(
            q, k, (((2,), (2,)), ((0,), (0,))),
            preferred_element_type=jnp.float32)               # (H, bq, bk) f32
        rows = qi * block_q + jax.lax.broadcasted_iota(
            jnp.int32, (block_q, block_k), 0)
        cols = ki * block_k + jax.lax.broadcasted_iota(
            jnp.int32, (block_q, block_k), 1)
        s = jnp.where((cols <= rows)[None], s, _MASK_VALUE)

        m_prev = m_ref[...]                                   # (H, bq, 1)
        m_new = jnp.maximum(m_prev, jnp.max(s, axis=-1, keepdims=True))
        alpha = jnp.exp(m_prev - m_new)
        p = jnp.exp(s - m_new)                                # (H, bq, bk)
        l_ref[...] = alpha * l_ref[...] + jnp.sum(p, axis=-1, keepdims=True)
        acc_ref[...] = alpha * acc_ref[...] + jax.lax.dot_general(
            p.astype(v.dtype), v, (((2,), (1,)), ((0,), (0,))),
            preferred_element_type=jnp.float32)               # (H, bq, hd)
        m_ref[...] = m_new

    # Epilogue once per q tile on the last KV step.
    @pl.when(ki == num_kv - 1)
    def _finalize():
        num_heads, bq, _ = acc_ref.shape
        d_model = wp_ref.shape[2]
        inv_l = pl.reciprocal(l_ref[...], approx=approx_recip)    # (H, bq, 1)
        # Per-head output projection accumulated into one (bq, D) slab:
        # mathematically identical to concat(heads) @ Wproj, but avoids an
        # in-kernel head-merge relayout.
        proj = jnp.zeros((bq, d_model), jnp.float32)
        for h in range(num_heads):
            y_h = (acc_ref[h] * inv_l[h]).astype(wp_ref.dtype)    # (bq, hd)
            proj = proj + jnp.dot(y_h, wp_ref[h],
                                  preferred_element_type=jnp.float32)
        attn_out = proj + bp_ref[0]
        # TODO(synk): dropout is identity (eval-mode semantics).
        if with_residuals:
            x2 = attn_out + x_ref[0].astype(jnp.float32)
        else:
            x2 = attn_out
        xn = _layer_norm(x2, ln2_g_ref[0], ln2_b_ref[0]).astype(w1_ref.dtype)
        h1 = jnp.dot(xn, w1_ref[...], preferred_element_type=jnp.float32) + b1_ref[0]
        h1 = jax.nn.gelu(h1, approximate=True).astype(w2_ref.dtype)
        mlp_out = (jnp.dot(h1, w2_ref[...], preferred_element_type=jnp.float32)
                   + b2_ref[0])
        out = mlp_out + x2 if with_residuals else mlp_out
        out_ref[0] = out.astype(out_ref.dtype)


# ---------------------------------------------------------------------------
# Wrapper.
# ---------------------------------------------------------------------------
def _vmem_limit_bytes(block_q, block_k, n_heads, head_dim, d_model, d_hidden,
                      compute_dtype):
    f32 = 4
    cd = jnp.dtype(compute_dtype).itemsize
    db = 2  # default double-buffering of pipelined blocks
    est = 0
    # activation tiles (kernel 2 dominates; kernel 1 is a subset)
    est += db * block_q * d_model * f32 * 2                     # x tile + out tile
    est += db * n_heads * block_q * head_dim * cd               # q tile
    est += db * 2 * n_heads * block_k * head_dim * cd           # k, v tiles
    # resident weights / params
    est += db * (3 * d_model * d_model + n_heads * head_dim * d_model
                 + 2 * d_model * d_hidden) * cd
    est += db * (6 * d_model + d_hidden) * f32                  # biases + LN
    # scratch + in-kernel temporaries (scores, exp, h1, ...)
    est += (2 * n_heads * block_q + n_heads * block_q * head_dim) * f32
    est += (2 * n_heads * block_q * block_k + block_q * d_hidden
            + 4 * block_q * d_model) * f32
    # generous margin, clamped so the request is valid on every generation
    # (>= 32 MiB default scoped limit, <= v7x's 64 MiB physical VMEM).
    return int(min(max(2 * est, 32 * 1024 * 1024), 64 * 1024 * 1024))


def transformer_decoder_block(x, params, *, n_heads, with_residuals,
                              block_q=256, block_k=256,
                              compute_dtype=jnp.float32, approx_recip=False):
    B, N, D = x.shape
    assert D % n_heads == 0
    head_dim = D // n_heads
    d_hidden = params["w1"].shape[1]

    block_q = min(block_q, N)
    block_k = min(block_k, N)
    assert N % block_q == 0 and N % block_k == 0, "pad N to a block multiple"
    assert block_q == N or block_q % 8 == 0
    assert block_k == N or block_k % 8 == 0
    num_q = N // block_q
    num_kv = N // block_k

    cd = compute_dtype
    # Pre-split the fused QKV weight -> three full-width matmuls (no sub-128
    # lane column slicing inside the kernel).  Cast big matrices to
    # compute_dtype (bf16 halves weight HBM/VMEM bytes); biases/LN stay f32.
    wq, wk, wv = [w.astype(cd) for w in jnp.split(params["wqkv"], 3, axis=1)]
    bq, bk, bv = jnp.split(params["bqkv"], 3, axis=1)
    wproj = params["wproj"].astype(cd)
    w1 = params["w1"].astype(cd)
    w2 = params["w2"].astype(cd)

    vmem_limit = _vmem_limit_bytes(block_q, block_k, n_heads, head_dim, D,
                                   d_hidden, cd)

    # ---- Kernel 1: LN1 + QKV projections -------------------------------------
    sm_scale = 1.0 / float(head_dim) ** 0.5
    row_spec = pl.BlockSpec((1, block_q, D), lambda b, i: (b, i, 0))
    c2 = lambda shape: pl.BlockSpec(shape, lambda b, i: (0,) * len(shape))

    q, k, v = pl.pallas_call(
        functools.partial(_qkv_kernel, sm_scale=sm_scale),
        out_shape=[jax.ShapeDtypeStruct((B, N, D), cd)] * 3,
        grid_spec=pltpu.PrefetchScalarGridSpec(
            num_scalar_prefetch=0,
            grid=(B, num_q),
            in_specs=[
                row_spec,                                    # x
                c2((1, D)), c2((1, D)),                      # ln1 gamma/beta
                c2((D, D)), c2((D, D)), c2((D, D)),          # Wq, Wk, Wv
                c2((1, D)), c2((1, D)), c2((1, D)),          # bq, bk, bv
            ],
            out_specs=[row_spec] * 3,
        ),
        compiler_params=pltpu.CompilerParams(
            dimension_semantics=("parallel", "parallel"),
            vmem_limit_bytes=vmem_limit),
    )(x, params["ln1_g"], params["ln1_b"], wq, wk, wv, bq, bk, bv)

    # ---- Wrapper-side layout plumbing (plain XLA) -----------------------------
    def to_heads(t):                     # (B, N, D) -> (B, H, N, hd)
        return t.reshape(B, N, n_heads, head_dim).transpose(0, 2, 1, 3)

    qh, kh, vh = to_heads(q), to_heads(k), to_heads(v)
    wproj_h = wproj.reshape(n_heads, head_dim, D)    # per-head output proj

    # ---- Kernel 2: flash attention + proj + LN2 + MLP -------------------------
    c3 = lambda shape: pl.BlockSpec(shape, lambda b, qi, ki: (0,) * len(shape))
    out = pl.pallas_call(
        functools.partial(_attn_mlp_kernel,
                          with_residuals=with_residuals,
                          approx_recip=approx_recip),
        out_shape=jax.ShapeDtypeStruct((B, N, D), x.dtype),
        grid_spec=pltpu.PrefetchScalarGridSpec(
            num_scalar_prefetch=0,
            grid=(B, num_q, num_kv),
            in_specs=[
                pl.BlockSpec((1, block_q, D),
                             lambda b, qi, ki: (b, qi, 0)),                  # x (residual)
                pl.BlockSpec((1, n_heads, block_q, head_dim),
                             lambda b, qi, ki: (b, 0, qi, 0)),               # q
                pl.BlockSpec((1, n_heads, block_k, head_dim),
                             lambda b, qi, ki: (b, 0, ki, 0)),               # k
                pl.BlockSpec((1, n_heads, block_k, head_dim),
                             lambda b, qi, ki: (b, 0, ki, 0)),               # v
                c3((n_heads, head_dim, D)),                                  # Wproj (per-head)
                c3((1, D)), c3((1, D)), c3((1, D)),                          # bproj, ln2 g/b
                c3((D, d_hidden)), c3((1, d_hidden)),                        # W1, b1
                c3((d_hidden, D)), c3((1, D)),                               # W2, b2
            ],
            out_specs=pl.BlockSpec((1, block_q, D),
                                   lambda b, qi, ki: (b, qi, 0)),
            scratch_shapes=[
                pltpu.VMEM((n_heads, block_q, 1), jnp.float32),         # running max
                pltpu.VMEM((n_heads, block_q, 1), jnp.float32),         # running sum
                pltpu.VMEM((n_heads, block_q, head_dim), jnp.float32),  # accumulator
            ],
        ),
        compiler_params=pltpu.CompilerParams(
            dimension_semantics=("parallel", "parallel", "arbitrary"),
            vmem_limit_bytes=vmem_limit),
    )(x, qh, kh, vh, wproj_h, params["bproj"], params["ln2_g"],
      params["ln2_b"], w1, params["b1"], w2, params["b2"])
    return out


# ---------------------------------------------------------------------------
# Parameters + pure-JAX reference.
# ---------------------------------------------------------------------------
def init_params(key, embed_size, mlp_hidden_size):
    D, Hm = embed_size, mlp_hidden_size
    ks = jax.random.split(key, 8)
    std = 0.02
    return {
        "ln1_g": jnp.ones((1, D), jnp.float32),
        "ln1_b": jnp.zeros((1, D), jnp.float32),
        "wqkv": std * jax.random.normal(ks[0], (D, 3 * D), jnp.float32),
        "bqkv": std * jax.random.normal(ks[1], (1, 3 * D), jnp.float32),
        "wproj": std * jax.random.normal(ks[2], (D, D), jnp.float32),
        "bproj": std * jax.random.normal(ks[3], (1, D), jnp.float32),
        "ln2_g": jnp.ones((1, D), jnp.float32),
        "ln2_b": jnp.zeros((1, D), jnp.float32),
        "w1": std * jax.random.normal(ks[4], (D, Hm), jnp.float32),
        "b1": std * jax.random.normal(ks[5], (1, Hm), jnp.float32),
        "w2": std * jax.random.normal(ks[6], (Hm, D), jnp.float32),
        "b2": std * jax.random.normal(ks[7], (1, D), jnp.float32),
    }


def reference(x, p, *, n_heads, with_residuals):
    def ln(z, g, b):
        m = z.mean(-1, keepdims=True)
        v = ((z - m) ** 2).mean(-1, keepdims=True)
        return (z - m) / jnp.sqrt(v + _LN_EPS) * g + b

    B, N, D = x.shape
    hd = D // n_heads
    h = ln(x, p["ln1_g"][0], p["ln1_b"][0])
    qkv = h @ p["wqkv"] + p["bqkv"][0]
    q, k, v = jnp.split(qkv, 3, axis=-1)
    q = q.reshape(B, N, n_heads, hd).transpose(0, 2, 1, 3)
    k = k.reshape(B, N, n_heads, hd).transpose(0, 2, 1, 3)
    v = v.reshape(B, N, n_heads, hd).transpose(0, 2, 1, 3)
    att = jnp.einsum("bhqd,bhkd->bhqk", q, k) / jnp.sqrt(jnp.float32(hd))
    mask = jnp.tril(jnp.ones((N, N), bool))
    att = jnp.where(mask, att, -jnp.inf)
    att = jax.nn.softmax(att, axis=-1)
    y = jnp.einsum("bhqk,bhkd->bhqd", att, v).transpose(0, 2, 1, 3).reshape(B, N, D)
    attn = y @ p["wproj"] + p["bproj"][0]
    x2 = attn + x if with_residuals else attn
    h = ln(x2, p["ln2_g"][0], p["ln2_b"][0])
    m = jax.nn.gelu(h @ p["w1"] + p["b1"][0], approximate=True) @ p["w2"] + p["b2"][0]
    return m + x2 if with_residuals else m


if __name__ == "__main__":
    B, N, D = 2, 8, 32          # batch, seq, embed
    n_heads = 4
    mlp_hidden = 64

    key = jax.random.PRNGKey(0)
    kx, kp = jax.random.split(key)
    x = jax.random.normal(kx, (B, N, D), jnp.float32)
    params = init_params(kp, D, mlp_hidden)

    # f32 path: strict correctness check against the pure-JAX reference.
    for with_res in (False, True):
        out = transformer_decoder_block(x, params, n_heads=n_heads,
                                        with_residuals=with_res)
        out = jax.block_until_ready(out)
        ref = reference(x, params, n_heads=n_heads, with_residuals=with_res)
        assert out.shape == (B, N, D)
        assert jnp.allclose(out, ref, atol=1e-4, rtol=1e-4), float(
            jnp.max(jnp.abs(out - ref)))

    # bf16-weight path (f32 accumulation) + approx reciprocal: the
    # v7x-friendly configuration; looser tolerance.
    out_bf16 = transformer_decoder_block(x, params, n_heads=n_heads,
                                         with_residuals=True,
                                         compute_dtype=jnp.bfloat16,
                                         approx_recip=True)
    out_bf16 = jax.block_until_ready(out_bf16)
    ref = reference(x, params, n_heads=n_heads, with_residuals=True)
    assert jnp.allclose(out_bf16, ref, atol=5e-2, rtol=5e-2)

    print("KERNEL_OK")
</pallas_src>

<mosaic_0001>
module attributes {stable_mosaic.version = 11 : i64} {
  func.func @_qkv_kernel(%arg0: i32, %arg1: i32, %arg2: memref<1x8x32xf32, #tpu.memory_space<vmem>>, %arg3: memref<1x32xf32, #tpu.memory_space<vmem>>, %arg4: memref<1x32xf32, #tpu.memory_space<vmem>>, %arg5: memref<32x32xf32, #tpu.memory_space<vmem>>, %arg6: memref<32x32xf32, #tpu.memory_space<vmem>>, %arg7: memref<32x32xf32, #tpu.memory_space<vmem>>, %arg8: memref<1x32xf32, #tpu.memory_space<vmem>>, %arg9: memref<1x32xf32, #tpu.memory_space<vmem>>, %arg10: memref<1x32xf32, #tpu.memory_space<vmem>>, %arg11: memref<1x8x32xf32, #tpu.memory_space<vmem>>, %arg12: memref<1x8x32xf32, #tpu.memory_space<vmem>>, %arg13: memref<1x8x32xf32, #tpu.memory_space<vmem>>) attributes {dimension_semantics = [#tpu.dimension_semantics<parallel>, #tpu.dimension_semantics<parallel>], iteration_bounds = array<i64: 2, 1>, scalar_prefetch = 0 : i64, scratch_operands = 0 : i64, tpu.core_type = #tpu.core_type<tc>, window_params = [{transform_indices = @transform_0, window_bounds = array<i64: 1, 8, 32>}, {pipeline_mode = #tpu.pipeline_mode<synchronous>, transform_indices = @transform_1, window_bounds = array<i64: 1, 32>}, {pipeline_mode = #tpu.pipeline_mode<synchronous>, transform_indices = @transform_2, window_bounds = array<i64: 1, 32>}, {pipeline_mode = #tpu.pipeline_mode<synchronous>, transform_indices = @transform_3, window_bounds = array<i64: 32, 32>}, {pipeline_mode = #tpu.pipeline_mode<synchronous>, transform_indices = @transform_4, window_bounds = array<i64: 32, 32>}, {pipeline_mode = #tpu.pipeline_mode<synchronous>, transform_indices = @transform_5, window_bounds = array<i64: 32, 32>}, {pipeline_mode = #tpu.pipeline_mode<synchronous>, transform_indices = @transform_6, window_bounds = array<i64: 1, 32>}, {pipeline_mode = #tpu.pipeline_mode<synchronous>, transform_indices = @transform_7, window_bounds = array<i64: 1, 32>}, {pipeline_mode = #tpu.pipeline_mode<synchronous>, transform_indices = @transform_8, window_bounds = array<i64: 1, 32>}, {transform_indices = @transform_9, window_bounds = array<i64: 1, 8, 32>}, {transform_indices = @transform_10, window_bounds = array<i64: 1, 8, 32>}, {transform_indices = @transform_11, window_bounds = array<i64: 1, 8, 32>}]} {
    %c0 = arith.constant 0 : index
    %c0_0 = arith.constant 0 : index
    %c0_1 = arith.constant 0 : index
    %0 = vector.load %arg2[%c0, %c0_0, %c0_1] : memref<1x8x32xf32, #tpu.memory_space<vmem>>, vector<1x8x32xf32>
    %1 = vector.shape_cast %0 : vector<1x8x32xf32> to vector<8x32xf32>
    %c0_2 = arith.constant 0 : index
    %c0_3 = arith.constant 0 : index
    %2 = vector.load %arg3[%c0_2, %c0_3] : memref<1x32xf32, #tpu.memory_space<vmem>>, vector<1x32xf32>
    %3 = vector.shape_cast %2 : vector<1x32xf32> to vector<32xf32>
    %c0_4 = arith.constant 0 : index
    %c0_5 = arith.constant 0 : index
    %4 = vector.load %arg4[%c0_4, %c0_5] : memref<1x32xf32, #tpu.memory_space<vmem>>, vector<1x32xf32>
    %5 = vector.shape_cast %4 : vector<1x32xf32> to vector<32xf32>
    %cst = arith.constant dense<0.000000e+00> : vector<8xf32>
    %6 = vector.multi_reduction <add>, %1, %cst [1] : vector<8x32xf32> to vector<8xf32>
    %7 = vector.shape_cast %6 : vector<8xf32> to vector<8x1xf32>
    %cst_6 = arith.constant 3.200000e+01 : f32
    %8 = vector.broadcast %cst_6 : f32 to vector<8x1xf32>
    %9 = arith.divf %7, %8 : vector<8x1xf32>
    %10 = vector.broadcast %9 : vector<8x1xf32> to vector<8x32xf32>
    %11 = arith.subf %1, %10 : vector<8x32xf32>
    %12 = arith.mulf %11, %11 : vector<8x32xf32>
    %cst_7 = arith.constant dense<0.000000e+00> : vector<8xf32>
    %13 = vector.multi_reduction <add>, %12, %cst_7 [1] : vector<8x32xf32> to vector<8xf32>
    %14 = vector.shape_cast %13 : vector<8xf32> to vector<8x1xf32>
    %cst_8 = arith.constant 3.200000e+01 : f32
    %15 = vector.broadcast %cst_8 : f32 to vector<8x1xf32>
    %16 = arith.divf %14, %15 : vector<8x1xf32>
    %17 = vector.broadcast %9 : vector<8x1xf32> to vector<8x32xf32>
    %18 = arith.subf %1, %17 : vector<8x32xf32>
    %cst_9 = arith.constant 9.99999974E-6 : f32
    %19 = vector.broadcast %cst_9 : f32 to vector<8x1xf32>
    %20 = arith.addf %16, %19 : vector<8x1xf32>
    %21 = math.rsqrt %20 : vector<8x1xf32>
    %22 = vector.broadcast %21 : vector<8x1xf32> to vector<8x32xf32>
    %23 = arith.mulf %18, %22 : vector<8x32xf32>
    %24 = vector.shape_cast %3 : vector<32xf32> to vector<1x32xf32>
    %25 = vector.broadcast %24 : vector<1x32xf32> to vector<8x32xf32>
    %26 = arith.mulf %23, %25 : vector<8x32xf32>
    %27 = vector.shape_cast %5 : vector<32xf32> to vector<1x32xf32>
    %28 = vector.broadcast %27 : vector<1x32xf32> to vector<8x32xf32>
    %29 = arith.addf %26, %28 : vector<8x32xf32>
    %c0_10 = arith.constant 0 : index
    %c0_11 = arith.constant 0 : index
    %30 = vector.load %arg5[%c0_10, %c0_11] : memref<32x32xf32, #tpu.memory_space<vmem>>, vector<32x32xf32>
    %cst_12 = arith.constant dense<0.000000e+00> : vector<8x32xf32>
    %31 = tpu.matmul %29, %30, %cst_12 {dimension_numbers = #tpu.dot_dimension_numbers<[1], [0], [0], [1], [0, 0, 1, 1], [], []>} : vector<8x32xf32>, vector<32x32xf32>, vector<8x32xf32> -> vector<8x32xf32>
    %c0_13 = arith.constant 0 : index
    %c0_14 = arith.constant 0 : index
    %32 = vector.load %arg8[%c0_13, %c0_14] : memref<1x32xf32, #tpu.memory_space<vmem>>, vector<1x32xf32>
    %33 = vector.shape_cast %32 : vector<1x32xf32> to vector<32xf32>
    %34 = vector.shape_cast %33 : vector<32xf32> to vector<1x32xf32>
    %35 = vector.broadcast %34 : vector<1x32xf32> to vector<8x32xf32>
    %36 = arith.addf %31, %35 : vector<8x32xf32>
    %c0_15 = arith.constant 0 : index
    %c0_16 = arith.constant 0 : index
    %37 = vector.load %arg6[%c0_15, %c0_16] : memref<32x32xf32, #tpu.memory_space<vmem>>, vector<32x32xf32>
    %cst_17 = arith.constant dense<0.000000e+00> : vector<8x32xf32>
    %38 = tpu.matmul %29, %37, %cst_17 {dimension_numbers = #tpu.dot_dimension_numbers<[1], [0], [0], [1], [0, 0, 1, 1], [], []>} : vector<8x32xf32>, vector<32x32xf32>, vector<8x32xf32> -> vector<8x32xf32>
    %c0_18 = arith.constant 0 : index
    %c0_19 = arith.constant 0 : index
    %39 = vector.load %arg9[%c0_18, %c0_19] : memref<1x32xf32, #tpu.memory_space<vmem>>, vector<1x32xf32>
    %40 = vector.shape_cast %39 : vector<1x32xf32> to vector<32xf32>
    %41 = vector.shape_cast %40 : vector<32xf32> to vector<1x32xf32>
    %42 = vector.broadcast %41 : vector<1x32xf32> to vector<8x32xf32>
    %43 = arith.addf %38, %42 : vector<8x32xf32>
    %c0_20 = arith.constant 0 : index
    %c0_21 = arith.constant 0 : index
    %44 = vector.load %arg7[%c0_20, %c0_21] : memref<32x32xf32, #tpu.memory_space<vmem>>, vector<32x32xf32>
    %cst_22 = arith.constant dense<0.000000e+00> : vector<8x32xf32>
    %45 = tpu.matmul %29, %44, %cst_22 {dimension_numbers = #tpu.dot_dimension_numbers<[1], [0], [0], [1], [0, 0, 1, 1], [], []>} : vector<8x32xf32>, vector<32x32xf32>, vector<8x32xf32> -> vector<8x32xf32>
    %c0_23 = arith.constant 0 : index
    %c0_24 = arith.constant 0 : index
    %46 = vector.load %arg10[%c0_23, %c0_24] : memref<1x32xf32, #tpu.memory_space<vmem>>, vector<1x32xf32>
    %47 = vector.shape_cast %46 : vector<1x32xf32> to vector<32xf32>
    %48 = vector.shape_cast %47 : vector<32xf32> to vector<1x32xf32>
    %49 = vector.broadcast %48 : vector<1x32xf32> to vector<8x32xf32>
    %50 = arith.addf %45, %49 : vector<8x32xf32>
    %cst_25 = arith.constant 0.353553385 : f32
    %51 = vector.broadcast %cst_25 : f32 to vector<8x32xf32>
    %52 = arith.mulf %36, %51 : vector<8x32xf32>
    %c0_26 = arith.constant 0 : index
    %c0_27 = arith.constant 0 : index
    %c0_28 = arith.constant 0 : index
    %53 = vector.load %arg11[%c0_26, %c0_27, %c0_28] : memref<1x8x32xf32, #tpu.memory_space<vmem>>, vector<1x8x32xf32>
    %54 = vector.shape_cast %53 : vector<1x8x32xf32> to vector<8x32xf32>
    %55 = vector.shape_cast %52 : vector<8x32xf32> to vector<1x8x32xf32>
    tpu.vector_store %arg11[%c0_26, %c0_27, %c0_28], %55 {strides = array<i32>} : memref<1x8x32xf32, #tpu.memory_space<vmem>>, vector<1x8x32xf32>,
    %c0_29 = arith.constant 0 : index
    %c0_30 = arith.constant 0 : index
    %c0_31 = arith.constant 0 : index
    %56 = vector.load %arg12[%c0_29, %c0_30, %c0_31] : memref<1x8x32xf32, #tpu.memory_space<vmem>>, vector<1x8x32xf32>
    %57 = vector.shape_cast %56 : vector<1x8x32xf32> to vector<8x32xf32>
    %58 = vector.shape_cast %43 : vector<8x32xf32> to vector<1x8x32xf32>
    tpu.vector_store %arg12[%c0_29, %c0_30, %c0_31], %58 {strides = array<i32>} : memref<1x8x32xf32, #tpu.memory_space<vmem>>, vector<1x8x32xf32>,
    %c0_32 = arith.constant 0 : index
    %c0_33 = arith.constant 0 : index
    %c0_34 = arith.constant 0 : index
    %59 = vector.load %arg13[%c0_32, %c0_33, %c0_34] : memref<1x8x32xf32, #tpu.memory_space<vmem>>, vector<1x8x32xf32>
    %60 = vector.shape_cast %59 : vector<1x8x32xf32> to vector<8x32xf32>
    %61 = vector.shape_cast %50 : vector<8x32xf32> to vector<1x8x32xf32>
    tpu.vector_store %arg13[%c0_32, %c0_33, %c0_34], %61 {strides = array<i32>} : memref<1x8x32xf32, #tpu.memory_space<vmem>>, vector<1x8x32xf32>,
    return
  }
  func.func @transform_0(%arg0: i32, %arg1: i32) -> (i32, i32, i32) {
    %c0_i32 = arith.constant 0 : i32
    %c0_i32_0 = arith.constant 0 : i32
    return %arg0, %arg1, %c0_i32 : i32, i32, i32
  }
  func.func @transform_1(%arg0: i32, %arg1: i32) -> (i32, i32) {
    %c0_i32 = arith.constant 0 : i32
    %c0_i32_0 = arith.constant 0 : i32
    %c0_i32_1 = arith.constant 0 : i32
    return %c0_i32, %c0_i32_0 : i32, i32
  }
  func.func @transform_2(%arg0: i32, %arg1: i32) -> (i32, i32) {
    %c0_i32 = arith.constant 0 : i32
    %c0_i32_0 = arith.constant 0 : i32
    %c0_i32_1 = arith.constant 0 : i32
    return %c0_i32, %c0_i32_0 : i32, i32
  }
  func.func @transform_3(%arg0: i32, %arg1: i32) -> (i32, i32) {
    %c0_i32 = arith.constant 0 : i32
    %c0_i32_0 = arith.constant 0 : i32
    %c0_i32_1 = arith.constant 0 : i32
    return %c0_i32, %c0_i32_0 : i32, i32
  }
  func.func @transform_4(%arg0: i32, %arg1: i32) -> (i32, i32) {
    %c0_i32 = arith.constant 0 : i32
    %c0_i32_0 = arith.constant 0 : i32
    %c0_i32_1 = arith.constant 0 : i32
    return %c0_i32, %c0_i32_0 : i32, i32
  }
  func.func @transform_5(%arg0: i32, %arg1: i32) -> (i32, i32) {
    %c0_i32 = arith.constant 0 : i32
    %c0_i32_0 = arith.constant 0 : i32
    %c0_i32_1 = arith.constant 0 : i32
    return %c0_i32, %c0_i32_0 : i32, i32
  }
  func.func @transform_6(%arg0: i32, %arg1: i32) -> (i32, i32) {
    %c0_i32 = arith.constant 0 : i32
    %c0_i32_0 = arith.constant 0 : i32
    %c0_i32_1 = arith.constant 0 : i32
    return %c0_i32, %c0_i32_0 : i32, i32
  }
  func.func @transform_7(%arg0: i32, %arg1: i32) -> (i32, i32) {
    %c0_i32 = arith.constant 0 : i32
    %c0_i32_0 = arith.constant 0 : i32
    %c0_i32_1 = arith.constant 0 : i32
    return %c0_i32, %c0_i32_0 : i32, i32
  }
  func.func @transform_8(%arg0: i32, %arg1: i32) -> (i32, i32) {
    %c0_i32 = arith.constant 0 : i32
    %c0_i32_0 = arith.constant 0 : i32
    %c0_i32_1 = arith.constant 0 : i32
    return %c0_i32, %c0_i32_0 : i32, i32
  }
  func.func @transform_9(%arg0: i32, %arg1: i32) -> (i32, i32, i32) {
    %c0_i32 = arith.constant 0 : i32
    %c0_i32_0 = arith.constant 0 : i32
    return %arg0, %arg1, %c0_i32 : i32, i32, i32
  }
  func.func @transform_10(%arg0: i32, %arg1: i32) -> (i32, i32, i32) {
    %c0_i32 = arith.constant 0 : i32
    %c0_i32_0 = arith.constant 0 : i32
    return %arg0, %arg1, %c0_i32 : i32, i32, i32
  }
  func.func @transform_11(%arg0: i32, %arg1: i32) -> (i32, i32, i32) {
    %c0_i32 = arith.constant 0 : i32
    %c0_i32_0 = arith.constant 0 : i32
    return %arg0, %arg1, %c0_i32 : i32, i32, i32
  }
}

</mosaic_0001>

<llo_original>
// kernel: tpu_custom_call.1
$region0: #{tpu_custom_call.1}
  #allocation0 [shape = 'u32[]', space=smem, size = 0x4, offset = 0x4, fixed_abs, tag = 'smem constant byte address 0x4 - core index']
  #allocation1 [shape = 'u32[144,128]{1,0:T(1,128)}', space=vmem, size = 0x12000, scoped, tag = 'internal scratch']
  %s0 = inlined_call_operand.hbm [shape: f32[2,8,32], index: 0, kind: input, shape index: {}]
  %s1 = inlined_call_operand.vmem [shape: f32[1,32], index: 1, kind: input, shape index: {}]
  %s2 = inlined_call_operand.vmem [shape: f32[1,32], index: 2, kind: input, shape index: {}]
  %s3 = inlined_call_operand.hbm [shape: f32[32,32], index: 3, kind: input, shape index: {}]
  %s4 = inlined_call_operand.hbm [shape: f32[32,32], index: 4, kind: input, shape index: {}]
  %s5 = inlined_call_operand.hbm [shape: f32[32,32], index: 5, kind: input, shape index: {}]
  %s6 = inlined_call_operand.vmem [shape: f32[1,32], index: 6, kind: input, shape index: {}]
  %s7 = inlined_call_operand.vmem [shape: f32[1,32], index: 7, kind: input, shape index: {}]
  %s8 = inlined_call_operand.vmem [shape: f32[1,32], index: 8, kind: input, shape index: {}]
  %s9 = inlined_call_operand.hbm [shape: f32[2,8,32], index: 9, kind: output, shape index: {0}]
  %s10 = inlined_call_operand.hbm [shape: f32[2,8,32], index: 10, kind: output, shape index: {1}]
  %s11 = inlined_call_operand.hbm [shape: f32[2,8,32], index: 11, kind: output, shape index: {2}]
  %12 = xla_tuple %s9, %s10, %s11
  %s13 = sld [smem:[#allocation0]]
  $region101: #{tpu_custom_call.1} parent=0
    _
  %s15 = ssub.s32 1, %s13
  %s16 = scalar_select 0, %s15, %s13
  $region1: #{tpu_custom_call.1} parent=0
    #allocation2 [shape = 'u8[8192]{0}', space=vmem, size = 0x2000, scoped, tag = 'input window, operand 0']
    #allocation3 [shape = 's32[2]{0}', space=sflag, size = 0x8, scoped, tag = 'scoped memory for tpu_custom_call.1']
    #allocation4 [shape = 's32[2]{0}', space=sflag, size = 0x8, scoped, tag = 'scoped memory for tpu_custom_call.1']
    #allocation5 [shape = 'u8[16384]{0}', space=vmem, size = 0x4000, scoped, tag = 'input window, operand 3, single buffered']
    #allocation6 [shape = 's32[1]{0}', space=sflag, size = 0x4, scoped, tag = 'scoped memory for tpu_custom_call.1']
    #allocation7 [shape = 'u8[16384]{0}', space=vmem, size = 0x4000, scoped, tag = 'input window, operand 4, single buffered']
    #allocation8 [shape = 'u8[16384]{0}', space=vmem, size = 0x4000, scoped, tag = 'input window, operand 5, single buffered']
    #allocation9 [shape = 's32[1]{0}', space=sflag, size = 0x4, scoped, tag = 'scoped memory for tpu_custom_call.1']
    #allocation10 [shape = 'u8[8192]{0}', space=vmem, size = 0x2000, scoped, tag = 'output window, operand 0']
    #allocation11 [shape = 'u8[8192]{0}', space=vmem, size = 0x2000, scoped, tag = 'output window, operand 1']
    #allocation12 [shape = 's32[2]{0}', space=sflag, size = 0x8, scoped, tag = 'scoped memory for tpu_custom_call.1']
    #allocation13 [shape = 'u8[8192]{0}', space=vmem, size = 0x2000, scoped, tag = 'output window, operand 2']
    %17 = vsyncpa [#allocation3], 0
    %s18 = scalar_lea.sflag [#allocation3], 1
    %19 = vsyncpa %s18, 0
    %20 = vsyncpa [#allocation6], 0
    %21 = vsyncpa [#allocation9], 0
    %22 = vsyncpa [#allocation4], 0
    %s23 = scalar_lea.sflag [#allocation4], 1
    %24 = vsyncpa %s23, 0
    %25 = vsyncpa [#allocation12], 0
    %s26 = scalar_lea.sflag [#allocation12], 1
    %27 = vsyncpa %s26, 0
    loop: start=0, step=1, limit=4
    $region2: #{tpu_custom_call.1} parent=1 // loop_pre_header
      _
    $region3: #{tpu_custom_call.1} parent=1 // loop_header
      %s29 = sphi 0, %s33
      %p30 = scmp.ge.s32.totalorder %s29, 4
      %s36 = sphi 0, %s48
      %s37 = sphi 0, %s44
      %s38 = sphi 0, %s36
      %s39 = sphi 0, %s37
      %s40 = sphi 0, %s38
      %s41 = sphi 0, %s39
      %s53 = sphi 0, %s55
      %s56 = sphi 0, %s53
      %s57 = sphi 0, %s56
      %s73 = sphi 0, %s57
      %s77 = sphi 0, %s77
      %s79 = sphi 0, %s77
      %s80 = sphi 0, %s79
      %s94 = sphi 0, %s80
      %s98 = sphi 0, %s98
      %s100 = sphi 0, %s98
      %s101 = sphi 0, %s100
      %s115 = sphi 0, %s101
      %s119 = sphi 0, %s119
      %s121 = sphi 0, %s119
      %s122 = sphi 0, %s121
      %s136 = sphi 0, %s122
      %s140 = sphi 0, %s140
      %s142 = sphi 0, %s140
      %s143 = sphi 0, %s142
      %s157 = sphi 0, %s143
      %s161 = sphi 0, %s161
      %s163 = sphi 0, %s161
      %s164 = sphi 0, %s163
      %s178 = sphi 0, %s164
      %s182 = sphi 0, %s182
      %s184 = sphi 0, %s182
      %s185 = sphi 0, %s184
      %s199 = sphi 0, %s185
      %s203 = sphi 0, %s203
      %s205 = sphi 0, %s203
      %s206 = sphi 0, %s205
      %s220 = sphi 0, %s206
      %s224 = sphi 0, %s224
      %s226 = sphi 0, %s224
      %s227 = sphi 0, %s226
      %s241 = sphi 0, %s227
      %s249 = sphi 0, %s251
      %s252 = sphi 0, %s249
      %s253 = sphi 0, %s252
      %s269 = sphi 0, %s253
      %s277 = sphi 0, %s279
      %s280 = sphi 0, %s277
      %s281 = sphi 0, %s280
      %s297 = sphi 0, %s281
      %s305 = sphi 0, %s307
      %s308 = sphi 0, %s305
      %s309 = sphi 0, %s308
      %s325 = sphi 0, %s309
    $region4: #{tpu_custom_call.1} parent=1 // loop_header_branch
      %32 = sbr.rel (%p30) target = $region8
    $region5: #{tpu_custom_call.1} parent=1 // loop_body
      %s34 = ssub.s32 %s29, 1
      %s35 = ssub.s32 %s29, 2
      %s42 = sadd.s32 1, %s37
      %p43 = scmp.ge.s32.totalorder %s42, 1
      %s44 = scalar_select %p43, 0, %s42
      %s45 = sadd.s32 1, %s36
      %s46 = scalar_select %p43, %s45, %s36
      %p47 = scmp.ge.s32.totalorder %s46, 2
      %s48 = scalar_select %p47, 0, %s46
      %s49 = ssub.s32 %s36, %s48
      %s50 = ssub.s32 %s37, %s44
      %s51 = sor.u32 %s49, %s50
      %p52 = scmp.eq.s32.totalorder %s51, 0
      %s54 = sadd.s32 %s53, 1
      %s55 = scalar_select %p52, %s53, %s54
      %p58 = pneg %p52
      %p59 = scmp.eq.s32.totalorder %s29, 1
      %p60 = por %p58, %p59
      %p61 = scmp.ne.s32.totalorder %s53, %s56
      %p62 = scmp.eq.s32.totalorder %s29, 0
      %p63 = por %p61, %p62
      %p64 = scmp.ne.s32.totalorder %s53, %s56
      %p65 = scmp.eq.s32.totalorder %s34, 1
      %p66 = por %p64, %p65
      %p67 = scmp.ne.s32.totalorder %s56, %s57
      %p68 = scmp.eq.s32.totalorder %s34, 0
      %p69 = por %p67, %p68
      %p70 = scmp.ne.s32.totalorder %s56, %s57
      %p71 = scmp.eq.s32.totalorder %s35, 1
      %p72 = por %p70, %p71
      %p74 = scmp.ne.s32.totalorder %s57, %s73
      %p75 = scmp.eq.s32.totalorder %s35, 0
      %p76 = por %p74, %p75
      %s78 = sadd.s32 %s77, 1
      %p81 = scmp.eq.s32.totalorder %s29, 1
      %p82 = scmp.ne.s32.totalorder %s77, %s79
      %p83 = scmp.eq.s32.totalorder %s29, 0
      %p84 = por %p82, %p83
      %p85 = scmp.ne.s32.totalorder %s77, %s79
      %p86 = scmp.eq.s32.totalorder %s34, 1
      %p87 = por %p85, %p86
      %p88 = scmp.ne.s32.totalorder %s79, %s80
      %p89 = scmp.eq.s32.totalorder %s34, 0
      %p90 = por %p88, %p89
      %p91 = scmp.ne.s32.totalorder %s79, %s80
      %p92 = scmp.eq.s32.totalorder %s35, 1
      %p93 = por %p91, %p92
      %p95 = scmp.ne.s32.totalorder %s80, %s94
      %p96 = scmp.eq.s32.totalorder %s35, 0
      %p97 = por %p95, %p96
      %s99 = sadd.s32 %s98, 1
      %p102 = scmp.eq.s32.totalorder %s29, 1
      %p103 = scmp.ne.s32.totalorder %s98, %s100
      %p104 = scmp.eq.s32.totalorder %s29, 0
      %p105 = por %p103, %p104
      %p106 = scmp.ne.s32.totalorder %s98, %s100
      %p107 = scmp.eq.s32.totalorder %s34, 1
      %p108 = por %p106, %p107
      %p109 = scmp.ne.s32.totalorder %s100, %s101
      %p110 = scmp.eq.s32.totalorder %s34, 0
      %p111 = por %p109, %p110
      %p112 = scmp.ne.s32.totalorder %s100, %s101
      %p113 = scmp.eq.s32.totalorder %s35, 1
      %p114 = por %p112, %p113
      %p116 = scmp.ne.s32.totalorder %s101, %s115
      %p117 = scmp.eq.s32.totalorder %s35, 0
      %p118 = por %p116, %p117
      %s120 = sadd.s32 %s119, 1
      %p123 = scmp.eq.s32.totalorder %s29, 1
      %p124 = scmp.ne.s32.totalorder %s119, %s121
      %p125 = scmp.eq.s32.totalorder %s29, 0
      %p126 = por %p124, %p125
      %p127 = scmp.ne.s32.totalorder %s119, %s121
      %p128 = scmp.eq.s32.totalorder %s34, 1
      %p129 = por %p127, %p128
      %p130 = scmp.ne.s32.totalorder %s121, %s122
      %p131 = scmp.eq.s32.totalorder %s34, 0
      %p132 = por %p130, %p131
      %p133 = scmp.ne.s32.totalorder %s121, %s122
      %p134 = scmp.eq.s32.totalorder %s35, 1
      %p135 = por %p133, %p134
      %p137 = scmp.ne.s32.totalorder %s122, %s136
      %p138 = scmp.eq.s32.totalorder %s35, 0
      %p139 = por %p137, %p138
      %s141 = sadd.s32 %s140, 1
      %p144 = scmp.eq.s32.totalorder %s29, 1
      %p145 = scmp.ne.s32.totalorder %s140, %s142
      %p146 = scmp.eq.s32.totalorder %s29, 0
      %p147 = por %p145, %p146
      %p148 = scmp.ne.s32.totalorder %s140, %s142
      %p149 = scmp.eq.s32.totalorder %s34, 1
      %p150 = por %p148, %p149
      %p151 = scmp.ne.s32.totalorder %s142, %s143
      %p152 = scmp.eq.s32.totalorder %s34, 0
      %p153 = por %p151, %p152
      %p154 = scmp.ne.s32.totalorder %s142, %s143
      %p155 = scmp.eq.s32.totalorder %s35, 1
      %p156 = por %p154, %p155
      %p158 = scmp.ne.s32.totalorder %s143, %s157
      %p159 = scmp.eq.s32.totalorder %s35, 0
      %p160 = por %p158, %p159
      %s162 = sadd.s32 %s161, 1
      %p165 = scmp.eq.s32.totalorder %s29, 1
      %p166 = scmp.ne.s32.totalorder %s161, %s163
      %p167 = scmp.eq.s32.totalorder %s29, 0
      %p168 = por %p166, %p167
      %p169 = scmp.ne.s32.totalorder %s161, %s163
      %p170 = scmp.eq.s32.totalorder %s34, 1
      %p171 = por %p169, %p170
      %p172 = scmp.ne.s32.totalorder %s163, %s164
      %p173 = scmp.eq.s32.totalorder %s34, 0
      %p174 = por %p172, %p173
      %p175 = scmp.ne.s32.totalorder %s163, %s164
      %p176 = scmp.eq.s32.totalorder %s35, 1
      %p177 = por %p175, %p176
      %p179 = scmp.ne.s32.totalorder %s164, %s178
      %p180 = scmp.eq.s32.totalorder %s35, 0
      %p181 = por %p179, %p180
      %s183 = sadd.s32 %s182, 1
      %p186 = scmp.eq.s32.totalorder %s29, 1
      %p187 = scmp.ne.s32.totalorder %s182, %s184
      %p188 = scmp.eq.s32.totalorder %s29, 0
      %p189 = por %p187, %p188
      %p190 = scmp.ne.s32.totalorder %s182, %s184
      %p191 = scmp.eq.s32.totalorder %s34, 1
      %p192 = por %p190, %p191
      %p193 = scmp.ne.s32.totalorder %s184, %s185
      %p194 = scmp.eq.s32.totalorder %s34, 0
      %p195 = por %p193, %p194
      %p196 = scmp.ne.s32.totalorder %s184, %s185
      %p197 = scmp.eq.s32.totalorder %s35, 1
      %p198 = por %p196, %p197
      %p200 = scmp.ne.s32.totalorder %s185, %s199
      %p201 = scmp.eq.s32.totalorder %s35, 0
      %p202 = por %p200, %p201
      %s204 = sadd.s32 %s203, 1
      %p207 = scmp.eq.s32.totalorder %s29, 1
      %p208 = scmp.ne.s32.totalorder %s203, %s205
      %p209 = scmp.eq.s32.totalorder %s29, 0
      %p210 = por %p208, %p209
      %p211 = scmp.ne.s32.totalorder %s203, %s205
      %p212 = scmp.eq.s32.totalorder %s34, 1
      %p213 = por %p211, %p212
      %p214 = scmp.ne.s32.totalorder %s205, %s206
      %p215 = scmp.eq.s32.totalorder %s34, 0
      %p216 = por %p214, %p215
      %p217 = scmp.ne.s32.totalorder %s205, %s206
      %p218 = scmp.eq.s32.totalorder %s35, 1
      %p219 = por %p217, %p218
      %p221 = scmp.ne.s32.totalorder %s206, %s220
      %p222 = scmp.eq.s32.totalorder %s35, 0
      %p223 = por %p221, %p222
      %s225 = sadd.s32 %s224, 1
      %p228 = scmp.eq.s32.totalorder %s29, 1
      %p229 = scmp.ne.s32.totalorder %s224, %s226
      %p230 = scmp.eq.s32.totalorder %s29, 0
      %p231 = por %p229, %p230
      %p232 = scmp.ne.s32.totalorder %s224, %s226
      %p233 = scmp.eq.s32.totalorder %s34, 1
      %p234 = por %p232, %p233
      %p235 = scmp.ne.s32.totalorder %s226, %s227
      %p236 = scmp.eq.s32.totalorder %s34, 0
      %p237 = por %p235, %p236
      %p238 = scmp.ne.s32.totalorder %s226, %s227
      %p239 = scmp.eq.s32.totalorder %s35, 1
      %p240 = por %p238, %p239
      %p242 = scmp.ne.s32.totalorder %s227, %s241
      %p243 = scmp.eq.s32.totalorder %s35, 0
      %p244 = por %p242, %p243
      %s245 = ssub.s32 %s36, %s48
      %s246 = ssub.s32 %s37, %s44
      %s247 = sor.u32 %s245, %s246
      %p248 = scmp.eq.s32.totalorder %s247, 0
      %s250 = sadd.s32 %s249, 1
      %s251 = scalar_select %p248, %s249, %s250
      %p254 = pneg %p248
      %p255 = scmp.eq.s32.totalorder %s29, 1
      %p256 = por %p254, %p255
      %p257 = scmp.ne.s32.totalorder %s249, %s252
      %p258 = scmp.eq.s32.totalorder %s29, 0
      %p259 = por %p257, %p258
      %p260 = scmp.ne.s32.totalorder %s249, %s252
      %p261 = scmp.eq.s32.totalorder %s34, 1
      %p262 = por %p260, %p261
      %p263 = scmp.ne.s32.totalorder %s252, %s253
      %p264 = scmp.eq.s32.totalorder %s34, 0
      %p265 = por %p263, %p264
      %p266 = scmp.ne.s32.totalorder %s252, %s253
      %p267 = scmp.eq.s32.totalorder %s35, 1
      %p268 = por %p266, %p267
      %p270 = scmp.ne.s32.totalorder %s253, %s269
      %p271 = scmp.eq.s32.totalorder %s35, 0
      %p272 = por %p270, %p271
      %s273 = ssub.s32 %s36, %s48
      %s274 = ssub.s32 %s37, %s44
      %s275 = sor.u32 %s273, %s274
      %p276 = scmp.eq.s32.totalorder %s275, 0
      %s278 = sadd.s32 %s277, 1
      %s279 = scalar_select %p276, %s277, %s278
      %p282 = pneg %p276
      %p283 = scmp.eq.s32.totalorder %s29, 1
      %p284 = por %p282, %p283
      %p285 = scmp.ne.s32.totalorder %s277, %s280
      %p286 = scmp.eq.s32.totalorder %s29, 0
      %p287 = por %p285, %p286
      %p288 = scmp.ne.s32.totalorder %s277, %s280
      %p289 = scmp.eq.s32.totalorder %s34, 1
      %p290 = por %p288, %p289
      %p291 = scmp.ne.s32.totalorder %s280, %s281
      %p292 = scmp.eq.s32.totalorder %s34, 0
      %p293 = por %p291, %p292
      %p294 = scmp.ne.s32.totalorder %s280, %s281
      %p295 = scmp.eq.s32.totalorder %s35, 1
      %p296 = por %p294, %p295
      %p298 = scmp.ne.s32.totalorder %s281, %s297
      %p299 = scmp.eq.s32.totalorder %s35, 0
      %p300 = por %p298, %p299
      %s301 = ssub.s32 %s36, %s48
      %s302 = ssub.s32 %s37, %s44
      %s303 = sor.u32 %s301, %s302
      %p304 = scmp.eq.s32.totalorder %s303, 0
      %s306 = sadd.s32 %s305, 1
      %s307 = scalar_select %p304, %s305, %s306
      %p310 = pneg %p304
      %p311 = scmp.eq.s32.totalorder %s29, 1
      %p312 = por %p310, %p311
      %p313 = scmp.ne.s32.totalorder %s305, %s308
      %p314 = scmp.eq.s32.totalorder %s29, 0
      %p315 = por %p313, %p314
      %p316 = scmp.ne.s32.totalorder %s305, %s308
      %p317 = scmp.eq.s32.totalorder %s34, 1
      %p318 = por %p316, %p317
      %p319 = scmp.ne.s32.totalorder %s308, %s309
      %p320 = scmp.eq.s32.totalorder %s34, 0
      %p321 = por %p319, %p320
      %p322 = scmp.ne.s32.totalorder %s308, %s309
      %p323 = scmp.eq.s32.totalorder %s35, 1
      %p324 = por %p322, %p323
      %p326 = scmp.ne.s32.totalorder %s309, %s325
      %p327 = scmp.eq.s32.totalorder %s35, 0
      %p328 = por %p326, %p327
      %p329 = scmp.le.s32.totalorder 1, %s29
      %p330 = scmp.lt.s32.totalorder %s29, 3
      %p331 = pnand %p329, %p330
      %p332 = pneg %p331
      // Predicated region
      $region9: #{tpu_custom_call.1} parent=5 // pred_check
        _
      $region10: #{tpu_custom_call.1} parent=5 // pred_check_branch
        %334 = sbr.rel (%p331) target = $region12
      $region11: #{tpu_custom_call.1} parent=5 // pred_region
        %s335 = ssub.s32 %s29, 1
        // Predicated region
        $region13: #{tpu_custom_call.1} parent=11 // pred_check
          %p336 = pneg %p90
        $region14: #{tpu_custom_call.1} parent=11 // pred_check_branch
          %338 = sbr.rel (%p336) target = $region16
        $region15: #{tpu_custom_call.1} parent=11 // pred_region
          _
        $region16: #{tpu_custom_call.1} parent=11 // pred_fallthru
          _
        // Predicated region
        $region17: #{tpu_custom_call.1} parent=11 // pred_check
          %p339 = pneg %p111
        $region18: #{tpu_custom_call.1} parent=11 // pred_check_branch
          %341 = sbr.rel (%p339) target = $region20
        $region19: #{tpu_custom_call.1} parent=11 // pred_region
          _
        $region20: #{tpu_custom_call.1} parent=11 // pred_fallthru
          _
        // Predicated region
        $region21: #{tpu_custom_call.1} parent=11 // pred_check
          %p342 = pneg %p132
        $region22: #{tpu_custom_call.1} parent=11 // pred_check_branch
          %344 = sbr.rel (%p342) target = $region24
        $region23: #{tpu_custom_call.1} parent=11 // pred_region
          %s346 = ssub.s32 512, 512
          %347 = vsyncadd [#allocation6], %s346
          %s348 = sshll.u32 [#allocation5], 4
          %s349 = int_to_ptr.vmem [resolvable:$true] %s348
          %354 = dma.hbm_to_vmem [thread:$0]  %s3, 512, %s349, [#allocation6], 128, 128, 8
        $region24: #{tpu_custom_call.1} parent=11 // pred_fallthru
          _
        // Predicated region
        $region25: #{tpu_custom_call.1} parent=11 // pred_check
          %p355 = pneg %p153
        $region26: #{tpu_custom_call.1} parent=11 // pred_check_branch
          %357 = sbr.rel (%p355) target = $region28
        $region27: #{tpu_custom_call.1} parent=11 // pred_region
          %s359 = ssub.s32 512, 512
          %360 = vsyncadd [#allocation6], %s359
          %s361 = sshll.u32 [#allocation7], 4
          %s362 = int_to_ptr.vmem [resolvable:$true] %s361
          %367 = dma.hbm_to_vmem [thread:$0]  %s4, 512, %s362, [#allocation6], 128, 128, 8
        $region28: #{tpu_custom_call.1} parent=11 // pred_fallthru
          _
        // Predicated region
        $region29: #{tpu_custom_call.1} parent=11 // pred_check
          %p368 = pneg %p174
        $region30: #{tpu_custom_call.1} parent=11 // pred_check_branch
          %370 = sbr.rel (%p368) target = $region32
        $region31: #{tpu_custom_call.1} parent=11 // pred_region
          %s372 = ssub.s32 512, 512
          %373 = vsyncadd [#allocation9], %s372
          %s374 = sshll.u32 [#allocation8], 4
          %s375 = int_to_ptr.vmem [resolvable:$true] %s374
          %380 = dma.hbm_to_vmem [thread:$0]  %s5, 512, %s375, [#allocation9], 128, 128, 8
        $region32: #{tpu_custom_call.1} parent=11 // pred_fallthru
          _
        // Predicated region
        $region33: #{tpu_custom_call.1} parent=11 // pred_check
          %p381 = pneg %p195
        $region34: #{tpu_custom_call.1} parent=11 // pred_check_branch
          %383 = sbr.rel (%p381) target = $region36
        $region35: #{tpu_custom_call.1} parent=11 // pred_region
          _
        $region36: #{tpu_custom_call.1} parent=11 // pred_fallthru
          _
        // Predicated region
        $region37: #{tpu_custom_call.1} parent=11 // pred_check
          %p384 = pneg %p216
        $region38: #{tpu_custom_call.1} parent=11 // pred_check_branch
          %386 = sbr.rel (%p384) target = $region40
        $region39: #{tpu_custom_call.1} parent=11 // pred_region
          _
        $region40: #{tpu_custom_call.1} parent=11 // pred_fallthru
          _
        // Predicated region
        $region41: #{tpu_custom_call.1} parent=11 // pred_check
          %p387 = pneg %p237
        $region42: #{tpu_custom_call.1} parent=11 // pred_check_branch
          %389 = sbr.rel (%p387) target = $region44
        $region43: #{tpu_custom_call.1} parent=11 // pred_region
          _
        $region44: #{tpu_custom_call.1} parent=11 // pred_fallthru
          _
      $region12: #{tpu_custom_call.1} parent=5 // pred_fallthru
        _
      %p390 = scmp.lt.s32.totalorder %s29, 2
      // Predicated region
      $region45: #{tpu_custom_call.1} parent=5 // pred_check
        %p391 = pneg %p390
      $region46: #{tpu_custom_call.1} parent=5 // pred_check_branch
        %393 = sbr.rel (%p391) target = $region48
      $region47: #{tpu_custom_call.1} parent=5 // pred_region
        // Predicated region
        $region49: #{tpu_custom_call.1} parent=47 // pred_check
          %p394 = pneg %p63
        $region50: #{tpu_custom_call.1} parent=47 // pred_check_branch
          %396 = sbr.rel (%p394) target = $region52
        $region51: #{tpu_custom_call.1} parent=47 // pred_region
          %s397 = sand.u32 %s53, 1
          %s398 = scalar_lea.sflag [#allocation3], %s397
          %s399 = sand.u32 %s53, 1
          %s400 = smul.addr %s399, 8
          %s401 = scalar_lea.vmem [#allocation2], %s400
          %s403 = ssub.s32 128, 128
          %404 = vsyncadd %s398, %s403
          %s405 = sadd.s32 %s37, %s36
          %s406 = smul.addr %s405, 128
          %s407 = scalar_lea.hbm %s0, %s406
          %s409 = sshll.u32 %s401, 4
          %s410 = int_to_ptr.vmem [resolvable:$true] %s409
          %412 = dma.hbm_to_vmem [thread:$0]  %s407, 128, %s410, %s398
        $region52: #{tpu_custom_call.1} parent=47 // pred_fallthru
          _
      $region48: #{tpu_custom_call.1} parent=5 // pred_fallthru
        _
      %p413 = scmp.le.s32.totalorder 1, %s29
      %p414 = scmp.lt.s32.totalorder %s29, 3
      %p415 = pnand %p413, %p414
      %p416 = pneg %p415
      // Predicated region
      $region53: #{tpu_custom_call.1} parent=5 // pred_check
        _
      $region54: #{tpu_custom_call.1} parent=5 // pred_check_branch
        %418 = sbr.rel (%p415) target = $region56
      $region55: #{tpu_custom_call.1} parent=5 // pred_region
        %s419 = ssub.s32 %s29, 1
        %s420 = sand.u32 %s56, 1
        %s421 = scalar_lea.sflag [#allocation3], %s420
        %s422 = sand.u32 %s56, 1
        %s423 = smul.addr %s422, 8
        %s424 = scalar_lea.vmem [#allocation2], %s423
        // Predicated region
        $region57: #{tpu_custom_call.1} parent=55 // pred_check
          %p425 = pneg %p69
        $region58: #{tpu_custom_call.1} parent=55 // pred_check_branch
          %427 = sbr.rel (%p425) target = $region60
        $region59: #{tpu_custom_call.1} parent=55 // pred_region
          %428 = dma.done %s421, 128
        $region60: #{tpu_custom_call.1} parent=55 // pred_fallthru
          _
        // Predicated region
        $region61: #{tpu_custom_call.1} parent=55 // pred_check
          %p429 = pneg %p132
        $region62: #{tpu_custom_call.1} parent=55 // pred_check_branch
          %431 = sbr.rel (%p429) target = $region64
        $region63: #{tpu_custom_call.1} parent=55 // pred_region
          %432 = dma.done [#allocation6], 512
        $region64: #{tpu_custom_call.1} parent=55 // pred_fallthru
          _
        // Predicated region
        $region65: #{tpu_custom_call.1} parent=55 // pred_check
          %p433 = pneg %p153
        $region66: #{tpu_custom_call.1} parent=55 // pred_check_branch
          %435 = sbr.rel (%p433) target = $region68
        $region67: #{tpu_custom_call.1} parent=55 // pred_region
          %436 = dma.done [#allocation6], 512
        $region68: #{tpu_custom_call.1} parent=55 // pred_fallthru
          _
        // Predicated region
        $region69: #{tpu_custom_call.1} parent=55 // pred_check
          %p437 = pneg %p174
        $region70: #{tpu_custom_call.1} parent=55 // pred_check_branch
          %439 = sbr.rel (%p437) target = $region72
        $region71: #{tpu_custom_call.1} parent=55 // pred_region
          %440 = dma.done [#allocation9], 512
        $region72: #{tpu_custom_call.1} parent=55 // pred_fallthru
          _
        %s441 = sand.u32 %s56, 1
        %s442 = scalar_lea.sflag [#allocation3], %s441
        %s443 = sand.u32 %s56, 1
        %s444 = smul.addr %s443, 8
        %s445 = scalar_lea.vmem [#allocation2], %s444
        %p446 = pneg %p69
        %p447 = pneg %p66
        %p448 = pneg %p90
        %p449 = pneg %p87
        %p450 = pneg %p111
        %p451 = pneg %p108
        %p452 = pneg %p132
        %p453 = pneg %p129
        %p454 = pneg %p153
        %p455 = pneg %p150
        %p456 = pneg %p174
        %p457 = pneg %p171
        %p458 = pneg %p195
        %p459 = pneg %p192
        %p460 = pneg %p216
        %p461 = pneg %p213
        %p462 = pneg %p237
        %p463 = pneg %p234
        %p464 = pneg %p265
        %p465 = pneg %p262
        %s466 = sand.u32 %s252, 1
        %s467 = scalar_lea.sflag [#allocation4], %s466
        %s468 = sand.u32 %s252, 1
        %s469 = smul.addr %s468, 8
        %s470 = scalar_lea.vmem [#allocation10], %s469
        %p471 = pneg %p293
        %p472 = pneg %p290
        %s473 = sand.u32 %s34, 1
        %s474 = scalar_lea.sflag [#allocation12], %s473
        %s475 = sand.u32 %s280, 1
        %s476 = smul.addr %s475, 8
        %s477 = scalar_lea.vmem [#allocation11], %s476
        %p478 = pneg %p321
        %p479 = pneg %p318
        %s480 = sand.u32 %s34, 1
        %s481 = scalar_lea.sflag [#allocation12], %s480
        %s482 = sand.u32 %s308, 1
        %s483 = smul.addr %s482, 8
        %s484 = scalar_lea.vmem [#allocation13], %s483
        %v485 = vld [vmem:[%s424] sm:$0xff]
        %v486 = vld [vmem:[%s1] sm:$0x1]
        %v487 = vld [vmem:[%s2] sm:$0x1]
        %vm488 = vcmask 261120
        %v489 = vsel %vm488, %v485, 0.0
        %490 = vadd.xlane.f32.xlu0 %v489
        %v491 = vpop.xlane.xlu0 %490
        %v492 = vrcp.pop 32.0
        %v493 = vmul.f32 %v491, %v492
        %v494 = vsub.f32 %v485, %v493
        %v495 = vmul.f32 %v494, %v494
        %v496 = vsel %vm488, %v495, 0.0
        %497 = vadd.xlane.f32.xlu0 %v496
        %v498 = vpop.xlane.xlu0 %497
        %v499 = vmul.f32 %v498, %v492
        %v500 = vadd.f32 %v499, 1e-05
        %v501 = vrsqrt.pop %v500
        %v502 = vmul.f32 %v494, %v501
        %v504 = vlaneseq
        %v505 = vshrl.u32 %v504, 7
        %v506 = vsub.s32 0, %v505
        %v507 = vrot.slane %v486, %v506
        %v509 = vmul.f32 %v502, %v507
        %v511 = vlaneseq
        %v512 = vshrl.u32 %v511, 7
        %v513 = vsub.s32 0, %v512
        %v514 = vrot.slane %v487, %v513
        %v516 = vadd.f32 %v509, %v514
        %v517 = vld [vmem:[#allocation5] sm:$0xff]
        %v518 = vld [vmem:[#allocation5 + $0x8] sm:$0xff]
        %v519 = vld [vmem:[#allocation5 + $0x10] sm:$0xff]
        %v520 = vld [vmem:[#allocation5 + $0x18] sm:$0xff]
        %v521 = vld [vmem:[%s6] sm:$0x1]
        %v523 = vlaneseq
        %v524 = vshrl.u32 %v523, 7
        %v525 = vsub.s32 0, %v524
        %v526 = vrot.slane %v521, %v525
        %v529 = vsel %vm488, %v516, 0
        %531 = vmatprep.subr.mxu0 0.0
        %532 = vmatpush1.msra.mxu0 %v517
        %533 = vmatprep.subr.mxu0 0.0
        %534 = vmatpush1.msra.mxu0 %v518
        %535 = vmatprep.subr.mxu0 0.0
        %536 = vmatpush1.msra.mxu0 %v519
        %537 = vmatprep.subr.mxu0 0.0
        %538 = vmatpush1.msra.mxu0 %v520
        %539 = vmatprep.subr.mxu0 0.0
        %540 = vmatpush1.msra.mxu0 0.0
        %541 = vmatprep.subr.mxu0 0.0
        %542 = vmatpush1.msra.mxu0 0.0
        %543 = vmatprep.subr.mxu0 0.0
        %544 = vmatpush1.msra.mxu0 0.0
        %545 = vmatprep.subr.mxu0 0.0
        %546 = vmatpush1.msra.mxu0 0.0
        %547 = vmatprep.subr.mxu0 0.0
        %548 = vmatpush1.msra.mxu0 0.0
        %549 = vmatprep.subr.mxu0 0.0
        %550 = vmatpush1.msra.mxu0 0.0
        %551 = vmatprep.subr.mxu0 0.0
        %552 = vmatpush1.msra.mxu0 0.0
        %553 = vmatprep.subr.mxu0 0.0
        %554 = vmatpush1.msra.mxu0 0.0
        %555 = vmatprep.subr.mxu0 0.0
        %556 = vmatpush1.msra.mxu0 0.0
        %557 = vmatprep.subr.mxu0 0.0
        %558 = vmatpush1.msra.mxu0 0.0
        %559 = vmatprep.subr.mxu0 0.0
        %560 = vmatpush1.msra.mxu0 0.0
        %561 = vmatprep.subr.mxu0 0.0
        %562 = vmatpush1.msra.mxu0 0.0
        %563 = vmatprep.subr.mxu0 0.0
        %564 = vmatpush1.msra.mxu0 0.0
        %565 = vmatprep.subr.mxu0 0.0
        %566 = vmatpush1.msra.mxu0 0.0
        %567 = vmatprep.subr.mxu0 0.0
        %568 = vmatpush1.msra.mxu0 0.0
        %569 = vmatprep.subr.mxu0 0.0
        %570 = vmatpush1.msra.mxu0 0.0
        %571 = vmatprep.subr.mxu0 0.0
        %572 = vmatpush1.msra.mxu0 0.0
        %573 = vmatprep.subr.mxu0 0.0
        %574 = vmatpush1.msra.mxu0 0.0
        %575 = vmatprep.subr.mxu0 0.0
        %576 = vmatpush1.msra.mxu0 0.0
        %577 = vmatprep.subr.mxu0 0.0
        %578 = vmatpush1.msra.mxu0 0.0
        %579 = vmatprep.subr.mxu0 0.0
        %580 = vmatpush1.msra.mxu0 0.0
        %581 = vmatprep.subr.mxu0 0.0
        %582 = vmatpush1.msra.mxu0 0.0
        %583 = vmatprep.subr.mxu0 0.0
        %584 = vmatpush1.msra.mxu0 0.0
        %585 = vmatprep.subr.mxu0 0.0
        %586 = vmatpush1.msra.mxu0 0.0
        %587 = vmatprep.subr.mxu0 0.0
        %588 = vmatpush1.msra.mxu0 0.0
        %589 = vmatprep.subr.mxu0 0.0
        %590 = vmatpush1.msra.mxu0 0.0
        %591 = vmatprep.subr.mxu0 0.0
        %592 = vmatpush1.msra.mxu0 0.0
        %593 = vmatprep.subr.mxu0 0.0
        %594 = vmatpush1.msra.mxu0 0.0
        %595 = vmatprep.mubr.f32.mxu0 0.0
        %596 = vmatmul.mubr.f32.gmra.mrb[0].mxu0 %v529
        %v597 = vpop.f32.mrb[0].mxu0
        %v598 = vadd.f32 %v526, %v597
        %v599 = vpop.f32.mrb[0].mxu0
        %600 = vdwg.mxu0
        %v601 = vld [vmem:[#allocation7] sm:$0xff]
        %v602 = vld [vmem:[#allocation7 + $0x8] sm:$0xff]
        %v603 = vld [vmem:[#allocation7 + $0x10] sm:$0xff]
        %v604 = vld [vmem:[#allocation7 + $0x18] sm:$0xff]
        %v605 = vld [vmem:[%s7] sm:$0x1]
        %v607 = vlaneseq
        %v608 = vshrl.u32 %v607, 7
        %v609 = vsub.s32 0, %v608
        %v610 = vrot.slane %v605, %v609
        %612 = vmatprep.subr.mxu0 0.0
        %613 = vmatpush1.msra.mxu0 %v601
        %614 = vmatprep.subr.mxu0 0.0
        %615 = vmatpush1.msra.mxu0 %v602
        %616 = vmatprep.subr.mxu0 0.0
        %617 = vmatpush1.msra.mxu0 %v603
        %618 = vmatprep.subr.mxu0 0.0
        %619 = vmatpush1.msra.mxu0 %v604
        %620 = vmatprep.subr.mxu0 0.0
        %621 = vmatpush1.msra.mxu0 0.0
        %622 = vmatprep.subr.mxu0 0.0
        %623 = vmatpush1.msra.mxu0 0.0
        %624 = vmatprep.subr.mxu0 0.0
        %625 = vmatpush1.msra.mxu0 0.0
        %626 = vmatprep.subr.mxu0 0.0
        %627 = vmatpush1.msra.mxu0 0.0
        %628 = vmatprep.subr.mxu0 0.0
        %629 = vmatpush1.msra.mxu0 0.0
        %630 = vmatprep.subr.mxu0 0.0
        %631 = vmatpush1.msra.mxu0 0.0
        %632 = vmatprep.subr.mxu0 0.0
        %633 = vmatpush1.msra.mxu0 0.0
        %634 = vmatprep.subr.mxu0 0.0
        %635 = vmatpush1.msra.mxu0 0.0
        %636 = vmatprep.subr.mxu0 0.0
        %637 = vmatpush1.msra.mxu0 0.0
        %638 = vmatprep.subr.mxu0 0.0
        %639 = vmatpush1.msra.mxu0 0.0
        %640 = vmatprep.subr.mxu0 0.0
        %641 = vmatpush1.msra.mxu0 0.0
        %642 = vmatprep.subr.mxu0 0.0
        %643 = vmatpush1.msra.mxu0 0.0
        %644 = vmatprep.subr.mxu0 0.0
        %645 = vmatpush1.msra.mxu0 0.0
        %646 = vmatprep.subr.mxu0 0.0
        %647 = vmatpush1.msra.mxu0 0.0
        %648 = vmatprep.subr.mxu0 0.0
        %649 = vmatpush1.msra.mxu0 0.0
        %650 = vmatprep.subr.mxu0 0.0
        %651 = vmatpush1.msra.mxu0 0.0
        %652 = vmatprep.subr.mxu0 0.0
        %653 = vmatpush1.msra.mxu0 0.0
        %654 = vmatprep.subr.mxu0 0.0
        %655 = vmatpush1.msra.mxu0 0.0
        %656 = vmatprep.subr.mxu0 0.0
        %657 = vmatpush1.msra.mxu0 0.0
        %658 = vmatprep.subr.mxu0 0.0
        %659 = vmatpush1.msra.mxu0 0.0
        %660 = vmatprep.subr.mxu0 0.0
        %661 = vmatpush1.msra.mxu0 0.0
        %662 = vmatprep.subr.mxu0 0.0
        %663 = vmatpush1.msra.mxu0 0.0
        %664 = vmatprep.subr.mxu0 0.0
        %665 = vmatpush1.msra.mxu0 0.0
        %666 = vmatprep.subr.mxu0 0.0
        %667 = vmatpush1.msra.mxu0 0.0
        %668 = vmatprep.subr.mxu0 0.0
        %669 = vmatpush1.msra.mxu0 0.0
        %670 = vmatprep.subr.mxu0 0.0
        %671 = vmatpush1.msra.mxu0 0.0
        %672 = vmatprep.subr.mxu0 0.0
        %673 = vmatpush1.msra.mxu0 0.0
        %674 = vmatprep.subr.mxu0 0.0
        %675 = vmatpush1.msra.mxu0 0.0
        %676 = vmatprep.mubr.f32.mxu0 0.0
        %677 = vmatmul.mubr.f32.gmra.mrb[0].mxu0 %v529
        %v678 = vpop.f32.mrb[0].mxu0
        %v679 = vadd.f32 %v610, %v678
        %v680 = vpop.f32.mrb[0].mxu0
        %681 = vdwg.mxu0
        %v682 = vld [vmem:[#allocation8] sm:$0xff]
        %v683 = vld [vmem:[#allocation8 + $0x8] sm:$0xff]
        %v684 = vld [vmem:[#allocation8 + $0x10] sm:$0xff]
        %v685 = vld [vmem:[#allocation8 + $0x18] sm:$0xff]
        %v686 = vld [vmem:[%s8] sm:$0x1]
        %v688 = vlaneseq
        %v689 = vshrl.u32 %v688, 7
        %v690 = vsub.s32 0, %v689
        %v691 = vrot.slane %v686, %v690
        %693 = vmatprep.subr.mxu0 0.0
        %694 = vmatpush1.msra.mxu0 %v682
        %695 = vmatprep.subr.mxu0 0.0
        %696 = vmatpush1.msra.mxu0 %v683
        %697 = vmatprep.subr.mxu0 0.0
        %698 = vmatpush1.msra.mxu0 %v684
        %699 = vmatprep.subr.mxu0 0.0
        %700 = vmatpush1.msra.mxu0 %v685
        %701 = vmatprep.subr.mxu0 0.0
        %702 = vmatpush1.msra.mxu0 0.0
        %703 = vmatprep.subr.mxu0 0.0
        %704 = vmatpush1.msra.mxu0 0.0
        %705 = vmatprep.subr.mxu0 0.0
        %706 = vmatpush1.msra.mxu0 0.0
        %707 = vmatprep.subr.mxu0 0.0
        %708 = vmatpush1.msra.mxu0 0.0
        %709 = vmatprep.subr.mxu0 0.0
        %710 = vmatpush1.msra.mxu0 0.0
        %711 = vmatprep.subr.mxu0 0.0
        %712 = vmatpush1.msra.mxu0 0.0
        %713 = vmatprep.subr.mxu0 0.0
        %714 = vmatpush1.msra.mxu0 0.0
        %715 = vmatprep.subr.mxu0 0.0
        %716 = vmatpush1.msra.mxu0 0.0
        %717 = vmatprep.subr.mxu0 0.0
        %718 = vmatpush1.msra.mxu0 0.0
        %719 = vmatprep.subr.mxu0 0.0
        %720 = vmatpush1.msra.mxu0 0.0
        %721 = vmatprep.subr.mxu0 0.0
        %722 = vmatpush1.msra.mxu0 0.0
        %723 = vmatprep.subr.mxu0 0.0
        %724 = vmatpush1.msra.mxu0 0.0
        %725 = vmatprep.subr.mxu0 0.0
        %726 = vmatpush1.msra.mxu0 0.0
        %727 = vmatprep.subr.mxu0 0.0
        %728 = vmatpush1.msra.mxu0 0.0
        %729 = vmatprep.subr.mxu0 0.0
        %730 = vmatpush1.msra.mxu0 0.0
        %731 = vmatprep.subr.mxu0 0.0
        %732 = vmatpush1.msra.mxu0 0.0
        %733 = vmatprep.subr.mxu0 0.0
        %734 = vmatpush1.msra.mxu0 0.0
        %735 = vmatprep.subr.mxu0 0.0
        %736 = vmatpush1.msra.mxu0 0.0
        %737 = vmatprep.subr.mxu0 0.0
        %738 = vmatpush1.msra.mxu0 0.0
        %739 = vmatprep.subr.mxu0 0.0
        %740 = vmatpush1.msra.mxu0 0.0
        %741 = vmatprep.subr.mxu0 0.0
        %742 = vmatpush1.msra.mxu0 0.0
        %743 = vmatprep.subr.mxu0 0.0
        %744 = vmatpush1.msra.mxu0 0.0
        %745 = vmatprep.subr.mxu0 0.0
        %746 = vmatpush1.msra.mxu0 0.0
        %747 = vmatprep.subr.mxu0 0.0
        %748 = vmatpush1.msra.mxu0 0.0
        %749 = vmatprep.subr.mxu0 0.0
        %750 = vmatpush1.msra.mxu0 0.0
        %751 = vmatprep.subr.mxu0 0.0
        %752 = vmatpush1.msra.mxu0 0.0
        %753 = vmatprep.subr.mxu0 0.0
        %754 = vmatpush1.msra.mxu0 0.0
        %755 = vmatprep.subr.mxu0 0.0
        %756 = vmatpush1.msra.mxu0 0.0
        %757 = vmatprep.mubr.f32.mxu0 0.0
        %758 = vmatmul.mubr.f32.gmra.mrb[0].mxu0 %v529
        %v759 = vpop.f32.mrb[0].mxu0
        %v760 = vadd.f32 %v691, %v759
        %v761 = vpop.f32.mrb[0].mxu0
        %762 = vdwg.mxu0
        %v763 = vmul.f32 %v598, 0.35355338
        %764 = vst.msk [vmem:[%s470] sm:$0xff] %vm488, %v763
        %765 = vst.msk [vmem:[%s477] sm:$0xff] %vm488, %v679
        %766 = vst.msk [vmem:[%s484] sm:$0xff] %vm488, %v760
        %s767 = sand.u32 %s252, 1
        %s768 = scalar_lea.sflag [#allocation4], %s767
        %s769 = sand.u32 %s252, 1
        %s770 = smul.addr %s769, 8
        %s771 = scalar_lea.vmem [#allocation10], %s770
        %s772 = sand.u32 %s34, 1
        %s773 = scalar_lea.sflag [#allocation12], %s772
        %s774 = sand.u32 %s280, 1
        %s775 = smul.addr %s774, 8
        %s776 = scalar_lea.vmem [#allocation11], %s775
        %s777 = sand.u32 %s34, 1
        %s778 = scalar_lea.sflag [#allocation12], %s777
        %s779 = sand.u32 %s308, 1
        %s780 = smul.addr %s779, 8
        %s781 = scalar_lea.vmem [#allocation13], %s780
        // Predicated region
        $region73: #{tpu_custom_call.1} parent=55 // pred_check
          %p782 = pneg %p262
        $region74: #{tpu_custom_call.1} parent=55 // pred_check_branch
          %784 = sbr.rel (%p782) target = $region76
        $region75: #{tpu_custom_call.1} parent=55 // pred_region
          %s786 = ssub.s32 128, 128
          %787 = vsyncadd %s768, %s786
          %s788 = sadd.s32 %s39, %s38
          %s789 = smul.addr %s788, 128
          %s790 = scalar_lea.hbm %s9, %s789
          %s792 = sshll.u32 %s771, 4
          %s793 = int_to_ptr.vmem [resolvable:$true] %s792
          %795 = dma.vmem_to_hbm [thread:$0]  %s793, 128, %s790, %s768
        $region76: #{tpu_custom_call.1} parent=55 // pred_fallthru
          _
        // Predicated region
        $region77: #{tpu_custom_call.1} parent=55 // pred_check
          %p796 = pneg %p290
        $region78: #{tpu_custom_call.1} parent=55 // pred_check_branch
          %798 = sbr.rel (%p796) target = $region80
        $region79: #{tpu_custom_call.1} parent=55 // pred_region
          %s800 = ssub.s32 128, 128
          %801 = vsyncadd %s773, %s800
          %s802 = sadd.s32 %s39, %s38
          %s803 = smul.addr %s802, 128
          %s804 = scalar_lea.hbm %s10, %s803
          %s806 = sshll.u32 %s776, 4
          %s807 = int_to_ptr.vmem [resolvable:$true] %s806
          %809 = dma.vmem_to_hbm [thread:$0]  %s807, 128, %s804, %s773
        $region80: #{tpu_custom_call.1} parent=55 // pred_fallthru
          _
        // Predicated region
        $region81: #{tpu_custom_call.1} parent=55 // pred_check
          %p810 = pneg %p318
        $region82: #{tpu_custom_call.1} parent=55 // pred_check_branch
          %812 = sbr.rel (%p810) target = $region84
        $region83: #{tpu_custom_call.1} parent=55 // pred_region
          %s814 = ssub.s32 128, 128
          %815 = vsyncadd %s778, %s814
          %s816 = sadd.s32 %s39, %s38
          %s817 = smul.addr %s816, 128
          %s818 = scalar_lea.hbm %s11, %s817
          %s820 = sshll.u32 %s781, 4
          %s821 = int_to_ptr.vmem [resolvable:$true] %s820
          %823 = dma.vmem_to_hbm [thread:$0]  %s821, 128, %s818, %s778
        $region84: #{tpu_custom_call.1} parent=55 // pred_fallthru
          _
      $region56: #{tpu_custom_call.1} parent=5 // pred_fallthru
        _
      %p824 = scmp.le.s32.totalorder 2, %s29
      // Predicated region
      $region85: #{tpu_custom_call.1} parent=5 // pred_check
        %p825 = pneg %p824
      $region86: #{tpu_custom_call.1} parent=5 // pred_check_branch
        %827 = sbr.rel (%p825) target = $region88
      $region87: #{tpu_custom_call.1} parent=5 // pred_region
        %s828 = ssub.s32 %s29, 2
        // Predicated region
        $region89: #{tpu_custom_call.1} parent=87 // pred_check
          %p829 = pneg %p268
        $region90: #{tpu_custom_call.1} parent=87 // pred_check_branch
          %831 = sbr.rel (%p829) target = $region92
        $region91: #{tpu_custom_call.1} parent=87 // pred_region
          %s832 = sand.u32 %s253, 1
          %s833 = scalar_lea.sflag [#allocation4], %s832
          %s834 = sand.u32 %s253, 1
          %s835 = smul.addr %s834, 8
          %s836 = scalar_lea.vmem [#allocation10], %s835
          %837 = dma.done %s833, 128
        $region92: #{tpu_custom_call.1} parent=87 // pred_fallthru
          _
        // Predicated region
        $region93: #{tpu_custom_call.1} parent=87 // pred_check
          %p838 = pneg %p296
        $region94: #{tpu_custom_call.1} parent=87 // pred_check_branch
          %840 = sbr.rel (%p838) target = $region96
        $region95: #{tpu_custom_call.1} parent=87 // pred_region
          %s841 = sand.u32 %s35, 1
          %s842 = scalar_lea.sflag [#allocation12], %s841
          %s843 = sand.u32 %s281, 1
          %s844 = smul.addr %s843, 8
          %s845 = scalar_lea.vmem [#allocation11], %s844
          %846 = dma.done %s842, 128
        $region96: #{tpu_custom_call.1} parent=87 // pred_fallthru
          _
        // Predicated region
        $region97: #{tpu_custom_call.1} parent=87 // pred_check
          %p847 = pneg %p324
        $region98: #{tpu_custom_call.1} parent=87 // pred_check_branch
          %849 = sbr.rel (%p847) target = $region100
        $region99: #{tpu_custom_call.1} parent=87 // pred_region
          %s850 = sand.u32 %s35, 1
          %s851 = scalar_lea.sflag [#allocation12], %s850
          %s852 = sand.u32 %s309, 1
          %s853 = smul.addr %s852, 8
          %s854 = scalar_lea.vmem [#allocation13], %s853
          %855 = dma.done %s851, 128
        $region100: #{tpu_custom_call.1} parent=87 // pred_fallthru
          _
      $region88: #{tpu_custom_call.1} parent=5 // pred_fallthru
        _
    $region6: #{tpu_custom_call.1} parent=1 // loop_footer
      %s33 = sadd.s32 1, %s29
    $region7: #{tpu_custom_call.1} parent=1 // loop_footer_branch
      %28 = sbr.rel target = $region3
    $region8: #{tpu_custom_call.1} parent=1 // loop_exit
      _
    %856 = vsyncpa [#allocation3], 1
    %s857 = scalar_lea.sflag [#allocation3], 1
    %858 = vsyncpa %s857, 1
    %859 = vsyncpa [#allocation6], 1
    %860 = vsyncpa [#allocation9], 1
    %861 = vsyncpa [#allocation4], 1
    %s862 = scalar_lea.sflag [#allocation4], 1
    %863 = vsyncpa %s862, 1
    %864 = vsyncpa [#allocation12], 1
    %s865 = scalar_lea.sflag [#allocation12], 1
    %866 = vsyncpa %s865, 1

</llo_original>
